<compile_context>
chip_gen: v5e
topology: v5e:2x2
jax: 0.10.0
libtpu: 0.0.40
codegen_flags: <defaults>
</compile_context>

<pallas_src>
import jax
import jax.numpy as jnp
from jax.experimental import pallas as pl
from jax.experimental.pallas import tpu as pltpu


def softmax_encoder_kernel(x_ref, w1_ref, b1_ref, w2_ref, b2_ref, o_ref):
    # x_ref is (G, B, item_size): G independent problems in one step.
    g, b, item_size = x_ref.shape
    x_dim = w2_ref.shape[1]

    # Flatten the (G, B) leading axes so both layers are a single fat MXU
    # matmul over G*B rows (better occupancy than G separate 8-row slivers).
    x2d = x_ref[...].reshape(g * b, item_size)

    # fc1 + ReLU (MXU matmul, f32 accumulate); b1 is (1, hidden) -> broadcasts.
    h = jnp.dot(x2d, w1_ref[...], preferred_element_type=jnp.float32)
    h = jnp.maximum(h + b1_ref[...], 0.0)

    # fc2; b2 is (1, x_dim) -> broadcasts.
    logits = jnp.dot(h, w2_ref[...], preferred_element_type=jnp.float32)
    logits = logits + b2_ref[...]

    # Numerically stable softmax over each problem's batch axis (dim=0 of the
    # per-problem (B, x_dim) slab == axis=1 of the (G, B, x_dim) view).
    logits = logits.reshape(g, b, x_dim)
    m = jnp.max(logits, axis=1, keepdims=True)
    e = jnp.exp(logits - m)
    denom = jnp.sum(e, axis=1, keepdims=True)
    o_ref[...] = (e / denom).astype(o_ref.dtype)


def softmax_encoder(x, w1, b1, w2, b2, *, problems_per_step=None):
    """SoftmaxEncoder forward.

    x : (B, item_size) for one problem, or (N, B, item_size) for N independent
        problems fused into a single pallas_call.
    w1: (item_size, hidden)   b1: (1, hidden)
    w2: (hidden, x_dim)       b2: (1, x_dim)
    problems_per_step: group size G per grid step.  Default None = all N
        problems in one step (best at small N).  For large N on v7x, pick
        G = N // 2 so each TensorCore gets one fat step.
    """
    squeeze = x.ndim == 2
    if squeeze:
        x = x[None]
    n, batch, item_size = x.shape
    hidden_dim = w1.shape[1]
    x_dim = w2.shape[1]
    assert w1.shape == (item_size, hidden_dim), "w1 must be (item_size, hidden) = fc1.weight.T"
    assert w2.shape == (hidden_dim, x_dim), "w2 must be (hidden, x_dim) = fc2.weight.T"

    g = n if problems_per_step is None else int(problems_per_step)
    assert n % g == 0, "problems_per_step must divide the number of problems"
    num_steps = n // g

    # Advisory cost estimate so XLA schedules this tiny call tightly.
    flops = 2 * n * batch * (item_size * hidden_dim + hidden_dim * x_dim)
    bytes_accessed = 4 * (x.size + w1.size + b1.size + w2.size + b2.size
                          + n * batch * x_dim)
    cost = pl.CostEstimate(
        flops=flops,
        transcendentals=n * batch * x_dim + n * x_dim,  # exp + per-column recip
        bytes_accessed=bytes_accessed)

    # Weights / biases: constant block index -> VMEM-resident across all grid
    # steps (no per-step re-DMA).  Only the x / out blocks advance with i.
    def resident(shape):
        return pl.BlockSpec(shape, lambda i: tuple(0 for _ in shape))

    out = pl.pallas_call(
        softmax_encoder_kernel,
        out_shape=jax.ShapeDtypeStruct((n, batch, x_dim), jnp.float32),
        grid=(num_steps,),
        in_specs=[
            pl.BlockSpec((g, batch, item_size), lambda i: (i, 0, 0)),
            resident(w1.shape),
            resident(b1.shape),
            resident(w2.shape),
            resident(b2.shape),
        ],
        out_specs=pl.BlockSpec((g, batch, x_dim), lambda i: (i, 0, 0)),
        compiler_params=pltpu.CompilerParams(
            dimension_semantics=("parallel",)),
        cost_estimate=cost,
    )(x, w1, b1, w2, b2)
    return out[0] if squeeze else out


def reference(x, w1, b1, w2, b2):
    h = jnp.maximum(x @ w1 + b1, 0.0)
    logits = h @ w2 + b2
    return jax.nn.softmax(logits, axis=-2)   # softmax over the batch axis


if __name__ == "__main__":
    # Small shapes consistent with the module's forward.
    batch, item_size, hidden_dim, x_dim = 8, 16, 32, 8
    n_problems = 4   # independent problems fused into one launch

    key = jax.random.PRNGKey(0)
    kx, k1, k2, k3, k4 = jax.random.split(key, 5)

    # N independent problems along the leading axis.
    x = jax.random.normal(kx, (n_problems, batch, item_size), dtype=jnp.float32)

    # Deterministic parameter init, mimicking nn.Linear's U(-1/sqrt(fan_in), +).
    bound1 = 1.0 / (item_size ** 0.5)
    w1 = jax.random.uniform(k1, (item_size, hidden_dim), jnp.float32,
                            minval=-bound1, maxval=bound1)
    b1 = jax.random.uniform(k2, (1, hidden_dim), jnp.float32,
                            minval=-bound1, maxval=bound1)
    bound2 = 1.0 / (hidden_dim ** 0.5)
    w2 = jax.random.uniform(k3, (hidden_dim, x_dim), jnp.float32,
                            minval=-bound2, maxval=bound2)
    b2 = jax.random.uniform(k4, (1, x_dim), jnp.float32,
                            minval=-bound2, maxval=bound2)

    ref = reference(x, w1, b1, w2, b2)

    # 1) Default path: ALL problems in a single grid step (grid collapsed).
    out = jax.block_until_ready(softmax_encoder(x, w1, b1, w2, b2))
    assert out.shape == (n_problems, batch, x_dim)
    assert jnp.allclose(jnp.sum(out, axis=1), 1.0, atol=1e-5)   # softmax over dim=0
    assert jnp.allclose(out, ref, atol=1e-5, rtol=1e-5)

    # 2) Grouped path (e.g. two fat steps, one per v7x TensorCore).
    out_g = jax.block_until_ready(
        softmax_encoder(x, w1, b1, w2, b2, problems_per_step=2))
    assert jnp.allclose(out_g, ref, atol=1e-5, rtol=1e-5)

    # 3) Single-problem (2-D) path matching the PyTorch module's signature.
    out2 = jax.block_until_ready(softmax_encoder(x[0], w1, b1, w2, b2))
    ref2 = reference(x[0], w1, b1, w2, b2)
    assert out2.shape == (batch, x_dim)
    assert jnp.allclose(jnp.sum(out2, axis=0), 1.0, atol=1e-5)
    assert jnp.allclose(out2, ref2, atol=1e-5, rtol=1e-5)

    print("KERNEL_OK")
</pallas_src>

<mosaic_0001>
module attributes {stable_mosaic.version = 11 : i64} {
  func.func @softmax_encoder_kernel(%arg0: i32, %arg1: memref<4x8x16xf32, #tpu.memory_space<vmem>>, %arg2: memref<16x32xf32, #tpu.memory_space<vmem>>, %arg3: memref<1x32xf32, #tpu.memory_space<vmem>>, %arg4: memref<32x8xf32, #tpu.memory_space<vmem>>, %arg5: memref<1x8xf32, #tpu.memory_space<vmem>>, %arg6: memref<4x8x8xf32, #tpu.memory_space<vmem>>) attributes {dimension_semantics = [#tpu.dimension_semantics<parallel>], iteration_bounds = array<i64: 1>, scalar_prefetch = 0 : i64, scratch_operands = 0 : i64, tpu.core_type = #tpu.core_type<tc>, window_params = [{transform_indices = @transform_0, window_bounds = array<i64: 4, 8, 16>}, {pipeline_mode = #tpu.pipeline_mode<synchronous>, transform_indices = @transform_1, window_bounds = array<i64: 16, 32>}, {pipeline_mode = #tpu.pipeline_mode<synchronous>, transform_indices = @transform_2, window_bounds = array<i64: 1, 32>}, {pipeline_mode = #tpu.pipeline_mode<synchronous>, transform_indices = @transform_3, window_bounds = array<i64: 32, 8>}, {pipeline_mode = #tpu.pipeline_mode<synchronous>, transform_indices = @transform_4, window_bounds = array<i64: 1, 8>}, {transform_indices = @transform_5, window_bounds = array<i64: 4, 8, 8>}]} {
    %c0 = arith.constant 0 : index
    %c0_0 = arith.constant 0 : index
    %c0_1 = arith.constant 0 : index
    %0 = vector.load %arg1[%c0, %c0_0, %c0_1] : memref<4x8x16xf32, #tpu.memory_space<vmem>>, vector<4x8x16xf32>
    %1 = vector.shape_cast %0 : vector<4x8x16xf32> to vector<32x16xf32>
    %c0_2 = arith.constant 0 : index
    %c0_3 = arith.constant 0 : index
    %2 = vector.load %arg2[%c0_2, %c0_3] : memref<16x32xf32, #tpu.memory_space<vmem>>, vector<16x32xf32>
    %cst = arith.constant dense<0.000000e+00> : vector<32x32xf32>
    %3 = tpu.matmul %1, %2, %cst {dimension_numbers = #tpu.dot_dimension_numbers<[1], [0], [0], [1], [0, 0, 1, 1], [], []>} : vector<32x16xf32>, vector<16x32xf32>, vector<32x32xf32> -> vector<32x32xf32>
    %c0_4 = arith.constant 0 : index
    %c0_5 = arith.constant 0 : index
    %4 = vector.load %arg3[%c0_4, %c0_5] : memref<1x32xf32, #tpu.memory_space<vmem>>, vector<1x32xf32>
    %5 = vector.broadcast %4 : vector<1x32xf32> to vector<32x32xf32>
    %6 = arith.addf %3, %5 : vector<32x32xf32>
    %cst_6 = arith.constant 0.000000e+00 : f32
    %7 = vector.broadcast %cst_6 : f32 to vector<32x32xf32>
    %8 = arith.maximumf %6, %7 : vector<32x32xf32>
    %c0_7 = arith.constant 0 : index
    %c0_8 = arith.constant 0 : index
    %9 = vector.load %arg4[%c0_7, %c0_8] : memref<32x8xf32, #tpu.memory_space<vmem>>, vector<32x8xf32>
    %cst_9 = arith.constant dense<0.000000e+00> : vector<32x8xf32>
    %10 = tpu.matmul %8, %9, %cst_9 {dimension_numbers = #tpu.dot_dimension_numbers<[1], [0], [0], [1], [0, 0, 1, 1], [], []>} : vector<32x32xf32>, vector<32x8xf32>, vector<32x8xf32> -> vector<32x8xf32>
    %c0_10 = arith.constant 0 : index
    %c0_11 = arith.constant 0 : index
    %11 = vector.load %arg5[%c0_10, %c0_11] : memref<1x8xf32, #tpu.memory_space<vmem>>, vector<1x8xf32>
    %12 = vector.broadcast %11 : vector<1x8xf32> to vector<32x8xf32>
    %13 = arith.addf %10, %12 : vector<32x8xf32>
    %14 = vector.shape_cast %13 : vector<32x8xf32> to vector<4x8x8xf32>
    %cst_12 = arith.constant dense<0xFF800000> : vector<4x8xf32>
    %15 = vector.multi_reduction <maximumf>, %14, %cst_12 [1] : vector<4x8x8xf32> to vector<4x8xf32>
    %16 = vector.shape_cast %15 : vector<4x8xf32> to vector<4x1x8xf32>
    %17 = vector.broadcast %16 : vector<4x1x8xf32> to vector<4x8x8xf32>
    %18 = arith.subf %14, %17 : vector<4x8x8xf32>
    %19 = math.exp %18 : vector<4x8x8xf32>
    %cst_13 = arith.constant dense<0.000000e+00> : vector<4x8xf32>
    %20 = vector.multi_reduction <add>, %19, %cst_13 [1] : vector<4x8x8xf32> to vector<4x8xf32>
    %21 = vector.shape_cast %20 : vector<4x8xf32> to vector<4x1x8xf32>
    %22 = vector.broadcast %21 : vector<4x1x8xf32> to vector<4x8x8xf32>
    %23 = arith.divf %19, %22 : vector<4x8x8xf32>
    %c0_14 = arith.constant 0 : index
    %c0_15 = arith.constant 0 : index
    %c0_16 = arith.constant 0 : index
    %24 = vector.load %arg6[%c0_14, %c0_15, %c0_16] : memref<4x8x8xf32, #tpu.memory_space<vmem>>, vector<4x8x8xf32>
    tpu.vector_store %arg6[%c0_14, %c0_15, %c0_16], %23 {strides = array<i32>} : memref<4x8x8xf32, #tpu.memory_space<vmem>>, vector<4x8x8xf32>,
    return
  }
  func.func @transform_0(%arg0: i32) -> (i32, i32, i32) {
    %c0_i32 = arith.constant 0 : i32
    %c0_i32_0 = arith.constant 0 : i32
    %c0_i32_1 = arith.constant 0 : i32
    return %arg0, %c0_i32, %c0_i32_0 : i32, i32, i32
  }
  func.func @transform_1(%arg0: i32) -> (i32, i32) {
    %c0_i32 = arith.constant 0 : i32
    %c0_i32_0 = arith.constant 0 : i32
    %c0_i32_1 = arith.constant 0 : i32
    return %c0_i32, %c0_i32_0 : i32, i32
  }
  func.func @transform_2(%arg0: i32) -> (i32, i32) {
    %c0_i32 = arith.constant 0 : i32
    %c0_i32_0 = arith.constant 0 : i32
    %c0_i32_1 = arith.constant 0 : i32
    return %c0_i32, %c0_i32_0 : i32, i32
  }
  func.func @transform_3(%arg0: i32) -> (i32, i32) {
    %c0_i32 = arith.constant 0 : i32
    %c0_i32_0 = arith.constant 0 : i32
    %c0_i32_1 = arith.constant 0 : i32
    return %c0_i32, %c0_i32_0 : i32, i32
  }
  func.func @transform_4(%arg0: i32) -> (i32, i32) {
    %c0_i32 = arith.constant 0 : i32
    %c0_i32_0 = arith.constant 0 : i32
    %c0_i32_1 = arith.constant 0 : i32
    return %c0_i32, %c0_i32_0 : i32, i32
  }
  func.func @transform_5(%arg0: i32) -> (i32, i32, i32) {
    %c0_i32 = arith.constant 0 : i32
    %c0_i32_0 = arith.constant 0 : i32
    %c0_i32_1 = arith.constant 0 : i32
    return %arg0, %c0_i32, %c0_i32_0 : i32, i32, i32
  }
}

</mosaic_0001>

<llo_original>
// kernel: tpu_custom_call.1
$region0: #{tpu_custom_call.1}
  #allocation0 [shape = 'u32[]', space=smem, size = 0x4, offset = 0x4, fixed_abs, tag = 'smem constant byte address 0x4 - core index']
  #allocation1 [shape = 'u32[72,128]{1,0:T(1,128)}', space=vmem, size = 0x9000, scoped, tag = 'internal scratch']
  %s0 = inlined_call_operand.vmem [shape: f32[4,8,16], index: 0, kind: input, shape index: {}]
  %s1 = inlined_call_operand.hbm [shape: f32[16,32], index: 1, kind: input, shape index: {}]
  %s2 = inlined_call_operand.vmem [shape: f32[1,32], index: 2, kind: input, shape index: {}]
  %s3 = inlined_call_operand.vmem [shape: f32[32,8], index: 3, kind: input, shape index: {}]
  %s4 = inlined_call_operand.vmem [shape: f32[1,8], index: 4, kind: input, shape index: {}]
  %s5 = inlined_call_operand.hbm [shape: f32[4,8,8], index: 5, kind: output, shape index: {}]
  %s6 = sld [smem:[#allocation0]]
  $region34: #{tpu_custom_call.1} parent=0
    _
  %s8 = ssub.s32 1, %s6
  %s9 = scalar_select 0, %s8, %s6
  $region1: #{tpu_custom_call.1} parent=0
    #allocation2 [shape = 'u8[8192]{0}', space=vmem, size = 0x2000, scoped, tag = 'input window, operand 1, single buffered']
    #allocation3 [shape = 's32[1]{0}', space=sflag, size = 0x4, scoped, tag = 'scoped memory for tpu_custom_call.1']
    #allocation4 [shape = 's32[1]{0}', space=sflag, size = 0x4, scoped, tag = 'scoped memory for tpu_custom_call.1']
    #allocation5 [shape = 'u8[16384]{0}', space=vmem, size = 0x4000, scoped, tag = 'output window, operand 0, single buffered']
    %10 = vsyncpa [#allocation3], 0
    %11 = vsyncpa [#allocation4], 0
    // Predicated region
    $region2: #{tpu_custom_call.1} parent=1 // pred_check
      _
    $region3: #{tpu_custom_call.1} parent=1 // pred_check_branch
      %13 = sbr.rel (0) target = $region5
    $region4: #{tpu_custom_call.1} parent=1 // pred_region
      _
    $region5: #{tpu_custom_call.1} parent=1 // pred_fallthru
      _
    // Predicated region
    $region6: #{tpu_custom_call.1} parent=1 // pred_check
      _
    $region7: #{tpu_custom_call.1} parent=1 // pred_check_branch
      %15 = sbr.rel (0) target = $region9
    $region8: #{tpu_custom_call.1} parent=1 // pred_region
      %17 = vsyncadd [#allocation3], 0
      %s18 = sshll.u32 %s1, 4
      %s19 = int_to_ptr.hbm [resolvable:$true] %s18
      %s20 = sshll.u32 [#allocation2], 4
      %s21 = int_to_ptr.vmem [resolvable:$true] %s20
      %26 = dma.hbm_to_vmem [thread:$0]  %s19, 256, %s21, [#allocation3], 128, 128, 8
    $region9: #{tpu_custom_call.1} parent=1 // pred_fallthru
      _
    // Predicated region
    $region10: #{tpu_custom_call.1} parent=1 // pred_check
      _
    $region11: #{tpu_custom_call.1} parent=1 // pred_check_branch
      %28 = sbr.rel (0) target = $region13
    $region12: #{tpu_custom_call.1} parent=1 // pred_region
      _
    $region13: #{tpu_custom_call.1} parent=1 // pred_fallthru
      _
    // Predicated region
    $region14: #{tpu_custom_call.1} parent=1 // pred_check
      _
    $region15: #{tpu_custom_call.1} parent=1 // pred_check_branch
      %30 = sbr.rel (0) target = $region17
    $region16: #{tpu_custom_call.1} parent=1 // pred_region
      _
    $region17: #{tpu_custom_call.1} parent=1 // pred_fallthru
      _
    // Predicated region
    $region18: #{tpu_custom_call.1} parent=1 // pred_check
      _
    $region19: #{tpu_custom_call.1} parent=1 // pred_check_branch
      %32 = sbr.rel (0) target = $region21
    $region20: #{tpu_custom_call.1} parent=1 // pred_region
      _
    $region21: #{tpu_custom_call.1} parent=1 // pred_fallthru
      _
    // Predicated region
    $region22: #{tpu_custom_call.1} parent=1 // pred_check
      _
    $region23: #{tpu_custom_call.1} parent=1 // pred_check_branch
      %34 = sbr.rel (0) target = $region25
    $region24: #{tpu_custom_call.1} parent=1 // pred_region
      %36 = dma.done [#allocation3], 256
    $region25: #{tpu_custom_call.1} parent=1 // pred_fallthru
      _
    %v37 = vld [vmem:[%s0] sm:$0xff]
    %v38 = vld [vmem:[%s0 + $0x8] sm:$0xff]
    %v39 = vld [vmem:[%s0 + $0x10] sm:$0xff]
    %v40 = vld [vmem:[%s0 + $0x18] sm:$0xff]
    %v41 = vld [vmem:[#allocation2] sm:$0xff]
    %v42 = vld [vmem:[#allocation2 + $0x8] sm:$0xff]
    %v43 = vld [vmem:[%s2] sm:$0x1]
    %v45 = vperm.slane %v43, 0
    %vm47 = vcmask 130048
    %v49 = vsel %vm47, %v37, 0
    %v52 = vsel %vm47, %v38, 0
    %v55 = vsel %vm47, %v39, 0
    %v58 = vsel %vm47, %v40, 0
    %60 = vmatpush.msra.mxu0 0.0
    %61 = vmatpush.msra.mxu0 0.0
    %62 = vmatpush.msra.mxu0 0.0
    %63 = vmatpush.msra.mxu0 0.0
    %64 = vmatpush.msra.mxu0 0.0
    %65 = vmatpush.msra.mxu0 0.0
    %66 = vmatpush.msra.mxu0 0.0
    %67 = vmatpush.msra.mxu0 0.0
    %68 = vmatpush.msra.mxu0 0.0
    %69 = vmatpush.msra.mxu0 0.0
    %70 = vmatpush.msra.mxu0 0.0
    %71 = vmatpush.msra.mxu0 0.0
    %72 = vmatpush.msra.mxu0 0.0
    %73 = vmatpush.msra.mxu0 0.0
    %74 = vmatpush.msra.mxu0 %v42
    %75 = vmatpush.msra.mxu0 %v41
    %76 = vmatmul.f32.gmra.mxu0 %v49
    %v77 = vpop.f32.mrf.mxu0
    %v78 = vadd.f32 %v45, %v77
    %79 = vmatmul.f32.gmra.mxu0 %v52
    %v80 = vpop.f32.mrf.mxu0
    %v81 = vadd.f32 %v45, %v80
    %82 = vmatmul.f32.gmra.mxu0 %v55
    %v83 = vpop.f32.mrf.mxu0
    %v84 = vadd.f32 %v45, %v83
    %85 = vmatmul.f32.gmra.mxu0 %v58
    %v86 = vpop.f32.mrf.mxu0
    %v87 = vadd.f32 %v45, %v86
    %88 = vdwg.mxu0
    %v89 = vmax.f32 %v78, 0.0
    %v90 = vmax.f32 %v81, 0.0
    %v91 = vmax.f32 %v84, 0.0
    %v92 = vmax.f32 %v87, 0.0
    %v93 = vld [vmem:[%s3] sm:$0xff]
    %v94 = vld [vmem:[%s3 + $0x8] sm:$0xff]
    %v95 = vld [vmem:[%s3 + $0x10] sm:$0xff]
    %v96 = vld [vmem:[%s3 + $0x18] sm:$0xff]
    %v97 = vld [vmem:[%s4] sm:$0x1]
    %v99 = vperm.slane %v97, 0
    %vm101 = vcmask 261120
    %v103 = vsel %vm101, %v89, 0
    %v106 = vsel %vm101, %v90, 0
    %v109 = vsel %vm101, %v91, 0
    %v112 = vsel %vm101, %v92, 0
    %114 = vmatpush.msra.mxu0 0.0
    %115 = vmatpush.msra.mxu0 0.0
    %116 = vmatpush.msra.mxu0 0.0
    %117 = vmatpush.msra.mxu0 0.0
    %118 = vmatpush.msra.mxu0 0.0
    %119 = vmatpush.msra.mxu0 0.0
    %120 = vmatpush.msra.mxu0 0.0
    %121 = vmatpush.msra.mxu0 0.0
    %122 = vmatpush.msra.mxu0 0.0
    %123 = vmatpush.msra.mxu0 0.0
    %124 = vmatpush.msra.mxu0 0.0
    %125 = vmatpush.msra.mxu0 0.0
    %126 = vmatpush.msra.mxu0 %v96
    %127 = vmatpush.msra.mxu0 %v95
    %128 = vmatpush.msra.mxu0 %v94
    %129 = vmatpush.msra.mxu0 %v93
    %130 = vmatmul.f32.gmra.mxu0 %v103
    %v131 = vpop.f32.mrf.mxu0
    %v132 = vadd.f32 %v99, %v131
    %133 = vmatmul.f32.gmra.mxu0 %v106
    %v134 = vpop.f32.mrf.mxu0
    %v135 = vadd.f32 %v99, %v134
    %136 = vmatmul.f32.gmra.mxu0 %v109
    %v137 = vpop.f32.mrf.mxu0
    %v138 = vadd.f32 %v99, %v137
    %139 = vmatmul.f32.gmra.mxu0 %v112
    %v140 = vpop.f32.mrf.mxu0
    %v141 = vadd.f32 %v99, %v140
    %142 = vdwg.mxu0
    %vm143 = vcmask 64512
    %v144 = vsel %vm143, %v132, -inf
    %v145 = vrot.slane %v144, 4
    %v146 = vmax.f32 %v144, %v145
    %v147 = vrot.slane %v146, 2
    %v148 = vmax.f32 %v146, %v147
    %v149 = vrot.slane %v148, 1
    %v150 = vmax.f32 %v148, %v149
    %v151 = vsel %vm143, %v135, -inf
    %v152 = vrot.slane %v151, 4
    %v153 = vmax.f32 %v151, %v152
    %v154 = vrot.slane %v153, 2
    %v155 = vmax.f32 %v153, %v154
    %v156 = vrot.slane %v155, 1
    %v157 = vmax.f32 %v155, %v156
    %v158 = vsel %vm143, %v138, -inf
    %v159 = vrot.slane %v158, 4
    %v160 = vmax.f32 %v158, %v159
    %v161 = vrot.slane %v160, 2
    %v162 = vmax.f32 %v160, %v161
    %v163 = vrot.slane %v162, 1
    %v164 = vmax.f32 %v162, %v163
    %v165 = vsel %vm143, %v141, -inf
    %v166 = vrot.slane %v165, 4
    %v167 = vmax.f32 %v165, %v166
    %v168 = vrot.slane %v167, 2
    %v169 = vmax.f32 %v167, %v168
    %v170 = vrot.slane %v169, 1
    %v171 = vmax.f32 %v169, %v170
    %v172 = vsub.f32 %v132, %v150
    %v173 = vsub.f32 %v135, %v157
    %v174 = vsub.f32 %v138, %v164
    %v175 = vsub.f32 %v141, %v171
    %v176 = vmul.f32 %v172, 1.442695
    %v177 = vpow.pop %v176
    %v178 = vmul.f32 %v173, 1.442695
    %v179 = vpow.pop %v178
    %v180 = vmul.f32 %v174, 1.442695
    %v181 = vpow.pop %v180
    %v182 = vmul.f32 %v175, 1.442695
    %v183 = vpow.pop %v182
    %v184 = vsel %vm143, %v177, 0.0
    %v185 = vrot.slane %v184, 4
    %v186 = vadd.f32 %v184, %v185
    %v187 = vrot.slane %v186, 2
    %v188 = vadd.f32 %v186, %v187
    %v189 = vrot.slane %v188, 1
    %v190 = vadd.f32 %v188, %v189
    %v191 = vsel %vm143, %v179, 0.0
    %v192 = vrot.slane %v191, 4
    %v193 = vadd.f32 %v191, %v192
    %v194 = vrot.slane %v193, 2
    %v195 = vadd.f32 %v193, %v194
    %v196 = vrot.slane %v195, 1
    %v197 = vadd.f32 %v195, %v196
    %v198 = vsel %vm143, %v181, 0.0
    %v199 = vrot.slane %v198, 4
    %v200 = vadd.f32 %v198, %v199
    %v201 = vrot.slane %v200, 2
    %v202 = vadd.f32 %v200, %v201
    %v203 = vrot.slane %v202, 1
    %v204 = vadd.f32 %v202, %v203
    %v205 = vsel %vm143, %v183, 0.0
    %v206 = vrot.slane %v205, 4
    %v207 = vadd.f32 %v205, %v206
    %v208 = vrot.slane %v207, 2
    %v209 = vadd.f32 %v207, %v208
    %v210 = vrot.slane %v209, 1
    %v211 = vadd.f32 %v209, %v210
    %v212 = vrcp.pop %v190
    %v213 = vmul.f32 %v190, %v212
    %v214 = vsub.f32 1.0, %v213
    %v215 = vmul.f32 %v212, %v214
    %v216 = vadd.f32 %v212, %v215
    %vm217 = vweird.f32 %v190
    %vm218 = vweird.f32 %v212
    %vm219 = vmor %vm217, %vm218
    %v220 = vsel %vm219, %v212, %v216
    %v221 = vand.u32 2147483647, %v190
    %vm222 = vcmp.eq.f32.partialorder %v221, 8.507059e+37
    %v223 = vand.u32 %v190, 2147483648
    %v224 = vor.u32 1.1754944e-38, %v223
    %v225 = vsel %vm222, %v224, %v220
    %v226 = vmul.f32 %v177, %v225
    %v227 = vrcp.pop %v197
    %v228 = vmul.f32 %v197, %v227
    %v229 = vsub.f32 1.0, %v228
    %v230 = vmul.f32 %v227, %v229
    %v231 = vadd.f32 %v227, %v230
    %vm232 = vweird.f32 %v197
    %vm233 = vweird.f32 %v227
    %vm234 = vmor %vm232, %vm233
    %v235 = vsel %vm234, %v227, %v231
    %v236 = vand.u32 2147483647, %v197
    %vm237 = vcmp.eq.f32.partialorder %v236, 8.507059e+37
    %v238 = vand.u32 %v197, 2147483648
    %v239 = vor.u32 1.1754944e-38, %v238
    %v240 = vsel %vm237, %v239, %v235
    %v241 = vmul.f32 %v179, %v240
    %v242 = vrcp.pop %v204
    %v243 = vmul.f32 %v204, %v242
    %v244 = vsub.f32 1.0, %v243
    %v245 = vmul.f32 %v242, %v244
    %v246 = vadd.f32 %v242, %v245
    %vm247 = vweird.f32 %v204
    %vm248 = vweird.f32 %v242
    %vm249 = vmor %vm247, %vm248
    %v250 = vsel %vm249, %v242, %v246
    %v251 = vand.u32 2147483647, %v204
    %vm252 = vcmp.eq.f32.partialorder %v251, 8.507059e+37
    %v253 = vand.u32 %v204, 2147483648
    %v254 = vor.u32 1.1754944e-38, %v253
    %v255 = vsel %vm252, %v254, %v250
    %v256 = vmul.f32 %v181, %v255
    %v257 = vrcp.pop %v211
    %v258 = vmul.f32 %v211, %v257
    %v259 = vsub.f32 1.0, %v258
    %v260 = vmul.f32 %v257, %v259
    %v261 = vadd.f32 %v257, %v260
    %vm262 = vweird.f32 %v211
    %vm263 = vweird.f32 %v257
    %vm264 = vmor %vm262, %vm263
    %v265 = vsel %vm264, %v257, %v261
    %v266 = vand.u32 2147483647, %v211
    %vm267 = vcmp.eq.f32.partialorder %v266, 8.507059e+37
    %v268 = vand.u32 %v211, 2147483648
    %v269 = vor.u32 1.1754944e-38, %v268
    %v270 = vsel %vm267, %v269, %v265
    %v271 = vmul.f32 %v183, %v270
    %272 = vst.msk [vmem:[#allocation5] sm:$0xff] %vm143, %v226
    %273 = vst.msk [vmem:[#allocation5 + $0x8] sm:$0xff] %vm143, %v241
    %274 = vst.msk [vmem:[#allocation5 + $0x10] sm:$0xff] %vm143, %v256
    %275 = vst.msk [vmem:[#allocation5 + $0x18] sm:$0xff] %vm143, %v271
    // Predicated region
    $region26: #{tpu_custom_call.1} parent=1 // pred_check
      _
    $region27: #{tpu_custom_call.1} parent=1 // pred_check_branch
      %277 = sbr.rel (0) target = $region29
    $region28: #{tpu_custom_call.1} parent=1 // pred_region
      %279 = vsyncadd [#allocation4], 0
      %s280 = sshll.u32 [#allocation5], 4
      %s281 = int_to_ptr.vmem [resolvable:$true] %s280
      %s282 = sshll.u32 %s5, 4
      %s283 = int_to_ptr.hbm [resolvable:$true] %s282
      %288 = dma.vmem_to_hbm [thread:$0]  %s281, 512, %s283, [#allocation4], 128, 128, 8
    $region29: #{tpu_custom_call.1} parent=1 // pred_fallthru
      _
    // Predicated region
    $region30: #{tpu_custom_call.1} parent=1 // pred_check
      _
    $region31: #{tpu_custom_call.1} parent=1 // pred_check_branch
      %290 = sbr.rel (0) target = $region33
    $region32: #{tpu_custom_call.1} parent=1 // pred_region
      %292 = dma.done [#allocation4], 512
    $region33: #{tpu_custom_call.1} parent=1 // pred_fallthru
      _
    %293 = vsyncpa [#allocation3], 1
    %294 = vsyncpa [#allocation4], 1

</llo_original>
